<compile_context>
chip_gen: v7x
topology: tpu7x:2x2x1
jax: 0.10.0
libtpu: 0.0.40
codegen_flags: <defaults>
</compile_context>

<pallas_src>
import functools

import jax
import jax.numpy as jnp
from jax.experimental import pallas as pl
from jax.experimental.pallas import tpu as pltpu


def _round_up(v, m):
    return ((v + m - 1) // m) * m


def _gaussian_kernel(x_ref, w_ref, mu2h_ref, icovh_ref, out_ref, *, no_exp):
    # x_ref:     (TN, D)   sample tile (input dtype)
    # w_ref:     (D, TM)   (mu * icov).T tile (input dtype, MXU operand)
    # mu2h_ref:  (1, TM)   -0.5 * sum(mu*mu*icov, -1) row, float32
    # icovh_ref: (1, D)    -0.5 / cov row, float32
    # out_ref:   (TN, TM)  likelihood tile
    x = x_ref[...]                                        # (TN, D)
    xf = x.astype(jnp.float32)

    # Per-row quadratic term (VPU/XLU, f32): -0.5 * sum_d x^2 / cov
    x2h = jnp.sum(xf * xf * icovh_ref[...], axis=-1, keepdims=True)    # (TN, 1)

    # Cross term on the MXU with f32 accumulation: sum_d x * mu / cov
    xm = jnp.dot(x, w_ref[...], preferred_element_type=jnp.float32)    # (TN, TM)

    ll = xm + x2h + mu2h_ref[...]                         # (TN, TM), f32: two bcast adds
    if not no_exp:
        ll = jnp.exp(ll)                                  # EUP, f32
    out_ref[...] = ll.astype(out_ref.dtype)


def gaussian_forward(x, mu, cov, *, no_exp=False, tn=512, tm=512):
    """Pallas equivalent of Gaussian(mu, cov).forward(x, no_exp).

    x: (N, D), mu: (M, 1, D), cov: (D,)  ->  (N, M) in x.dtype
    """
    N, D = x.shape
    M = mu.shape[0]

    mu2d = mu[:, 0, :]                                     # (M, D)
    icov = (1.0 / cov.astype(jnp.float32)).reshape(1, D)   # (1, D) f32
    icov_half = -0.5 * icov                                # (1, D) f32

    # Tile sizes: cap by (aligned) problem size; keep output last dim a 128-multiple.
    tn = min(tn, _round_up(N, 8))
    tm = min(tm, _round_up(M, 128))
    n_pad = _round_up(N, tn)
    m_pad = _round_up(M, tm)

    # Pad samples along N (zero rows are harmless; sliced away at the end).
    x_p = x if n_pad == N else jnp.pad(x, ((0, n_pad - N), (0, 0)))

    # Precompute (once, in f32) the scaled means and per-class quadratic term.
    mu_f32 = mu2d.astype(jnp.float32)
    w = (mu_f32 * icov).T.astype(x.dtype)                               # (D, M)
    mu2h = jnp.sum(mu_f32 * mu_f32 * icov_half, axis=-1).reshape(1, M)  # (1, M) f32
    if m_pad != M:
        # Zero-padded classes -> ll = x2h <= 0, exp <= 1 (no overflow); sliced away.
        w = jnp.pad(w, ((0, 0), (0, m_pad - M)))
        mu2h = jnp.pad(mu2h, ((0, 0), (0, m_pad - M)))

    kernel = functools.partial(_gaussian_kernel, no_exp=no_exp)

    itemsize = jnp.dtype(x.dtype).itemsize
    cost = pl.CostEstimate(
        flops=2 * n_pad * m_pad * D + 3 * n_pad * D + 2 * n_pad * m_pad,
        transcendentals=0 if no_exp else n_pad * m_pad,
        bytes_accessed=(n_pad * D + D * m_pad + n_pad * m_pad) * itemsize
        + (m_pad + D) * 4,
    )

    out = pl.pallas_call(
        kernel,
        out_shape=jax.ShapeDtypeStruct((n_pad, m_pad), x.dtype),
        grid_spec=pltpu.PrefetchScalarGridSpec(
            num_scalar_prefetch=0,
            grid=(n_pad // tn, m_pad // tm),
            in_specs=[
                pl.BlockSpec((tn, D), lambda i, j: (i, 0)),    # x tile
                pl.BlockSpec((D, tm), lambda i, j: (0, j)),    # (mu/cov).T tile
                pl.BlockSpec((1, tm), lambda i, j: (0, j)),    # mu2h row tile (f32)
                pl.BlockSpec((1, D), lambda i, j: (0, 0)),     # -0.5/cov row (f32)
            ],
            out_specs=pl.BlockSpec((tn, tm), lambda i, j: (i, j)),
        ),
        compiler_params=pltpu.CompilerParams(
            dimension_semantics=("parallel", "parallel")),
        cost_estimate=cost,
    )(x_p, w, mu2h, icov_half)

    return out[:N, :M]


def gaussian_reference(x, mu, cov, *, no_exp=False):
    """Pure-JAX reference mirroring the PyTorch forward."""
    diff = x[:, None, :] - mu[None, :, 0, :]
    ll = -0.5 * jnp.sum(diff * diff * (1.0 / cov)[None, None, :], axis=2)
    return ll if no_exp else jnp.exp(ll)


if __name__ == "__main__":
    key = jax.random.PRNGKey(0)
    k_x, k_mu, k_cov, k_x2, k_mu2 = jax.random.split(key, 5)

    # Small synthetic shapes; N deliberately not tile-aligned to exercise padding.
    N, M, D = 20, 4, 32
    x = jax.random.normal(k_x, (N, D), dtype=jnp.float32)
    mu = jax.random.normal(k_mu, (M, 1, D), dtype=jnp.float32)   # module's mu shape
    cov = jax.random.uniform(k_cov, (D,), dtype=jnp.float32,
                             minval=0.5, maxval=1.5)             # positive diag cov

    out = jax.block_until_ready(gaussian_forward(x, mu, cov, no_exp=False))
    ref = gaussian_reference(x, mu, cov, no_exp=False)
    assert out.shape == (N, M)
    assert jnp.allclose(out, ref, atol=1e-4, rtol=1e-4)

    # no_exp path
    out_ne = jax.block_until_ready(gaussian_forward(x, mu, cov, no_exp=True))
    ref_ne = gaussian_reference(x, mu, cov, no_exp=True)
    assert jnp.allclose(out_ne, ref_ne, atol=1e-4, rtol=1e-4)

    # Second case: M not a multiple of 128 (exercises class padding) and odd-ish N.
    N2, M2, D2 = 37, 130, 64
    x2 = jax.random.normal(k_x2, (N2, D2), dtype=jnp.float32)
    mu2 = jax.random.normal(k_mu2, (M2, 1, D2), dtype=jnp.float32)
    cov2 = jnp.full((D2,), 0.8, dtype=jnp.float32)
    out2 = jax.block_until_ready(gaussian_forward(x2, mu2, cov2))
    ref2 = gaussian_reference(x2, mu2, cov2)
    assert out2.shape == (N2, M2)
    assert jnp.allclose(out2, ref2, atol=1e-4, rtol=1e-4)

    print("KERNEL_OK")
</pallas_src>

<mosaic_0001>
module attributes {stable_mosaic.version = 11 : i64} {
  func.func @_gaussian_kernel(%arg0: i32, %arg1: i32, %arg2: memref<24x32xf32, #tpu.memory_space<vmem>>, %arg3: memref<32x128xf32, #tpu.memory_space<vmem>>, %arg4: memref<1x128xf32, #tpu.memory_space<vmem>>, %arg5: memref<1x32xf32, #tpu.memory_space<vmem>>, %arg6: memref<24x128xf32, #tpu.memory_space<vmem>>) attributes {dimension_semantics = [#tpu.dimension_semantics<parallel>, #tpu.dimension_semantics<parallel>], iteration_bounds = array<i64: 1, 1>, scalar_prefetch = 0 : i64, scratch_operands = 0 : i64, tpu.core_type = #tpu.core_type<tc>, window_params = [{transform_indices = @transform_0, window_bounds = array<i64: 24, 32>}, {transform_indices = @transform_1, window_bounds = array<i64: 32, 128>}, {transform_indices = @transform_2, window_bounds = array<i64: 1, 128>}, {pipeline_mode = #tpu.pipeline_mode<synchronous>, transform_indices = @transform_3, window_bounds = array<i64: 1, 32>}, {transform_indices = @transform_4, window_bounds = array<i64: 24, 128>}]} {
    %c0 = arith.constant 0 : index
    %c0_0 = arith.constant 0 : index
    %0 = vector.load %arg2[%c0, %c0_0] : memref<24x32xf32, #tpu.memory_space<vmem>>, vector<24x32xf32>
    %1 = arith.mulf %0, %0 : vector<24x32xf32>
    %c0_1 = arith.constant 0 : index
    %c0_2 = arith.constant 0 : index
    %2 = vector.load %arg5[%c0_1, %c0_2] : memref<1x32xf32, #tpu.memory_space<vmem>>, vector<1x32xf32>
    %3 = vector.broadcast %2 : vector<1x32xf32> to vector<24x32xf32>
    %4 = arith.mulf %1, %3 : vector<24x32xf32>
    %cst = arith.constant dense<0.000000e+00> : vector<24xf32>
    %5 = vector.multi_reduction <add>, %4, %cst [1] : vector<24x32xf32> to vector<24xf32>
    %6 = vector.shape_cast %5 : vector<24xf32> to vector<24x1xf32>
    %c0_3 = arith.constant 0 : index
    %c0_4 = arith.constant 0 : index
    %7 = vector.load %arg3[%c0_3, %c0_4] : memref<32x128xf32, #tpu.memory_space<vmem>>, vector<32x128xf32>
    %cst_5 = arith.constant dense<0.000000e+00> : vector<24x128xf32>
    %8 = tpu.matmul %0, %7, %cst_5 {dimension_numbers = #tpu.dot_dimension_numbers<[1], [0], [0], [1], [0, 0, 1, 1], [], []>} : vector<24x32xf32>, vector<32x128xf32>, vector<24x128xf32> -> vector<24x128xf32>
    %9 = vector.broadcast %6 : vector<24x1xf32> to vector<24x128xf32>
    %10 = arith.addf %8, %9 : vector<24x128xf32>
    %c0_6 = arith.constant 0 : index
    %c0_7 = arith.constant 0 : index
    %11 = vector.load %arg4[%c0_6, %c0_7] : memref<1x128xf32, #tpu.memory_space<vmem>>, vector<1x128xf32>
    %12 = vector.broadcast %11 : vector<1x128xf32> to vector<24x128xf32>
    %13 = arith.addf %10, %12 : vector<24x128xf32>
    %14 = math.exp %13 : vector<24x128xf32>
    %c0_8 = arith.constant 0 : index
    %c0_9 = arith.constant 0 : index
    %15 = vector.load %arg6[%c0_8, %c0_9] : memref<24x128xf32, #tpu.memory_space<vmem>>, vector<24x128xf32>
    tpu.vector_store %arg6[%c0_8, %c0_9], %14 {strides = array<i32>} : memref<24x128xf32, #tpu.memory_space<vmem>>, vector<24x128xf32>,
    return
  }
  func.func @transform_0(%arg0: i32, %arg1: i32) -> (i32, i32) {
    %c0_i32 = arith.constant 0 : i32
    %c0_i32_0 = arith.constant 0 : i32
    return %arg0, %c0_i32 : i32, i32
  }
  func.func @transform_1(%arg0: i32, %arg1: i32) -> (i32, i32) {
    %c0_i32 = arith.constant 0 : i32
    %c0_i32_0 = arith.constant 0 : i32
    return %c0_i32, %arg1 : i32, i32
  }
  func.func @transform_2(%arg0: i32, %arg1: i32) -> (i32, i32) {
    %c0_i32 = arith.constant 0 : i32
    %c0_i32_0 = arith.constant 0 : i32
    return %c0_i32, %arg1 : i32, i32
  }
  func.func @transform_3(%arg0: i32, %arg1: i32) -> (i32, i32) {
    %c0_i32 = arith.constant 0 : i32
    %c0_i32_0 = arith.constant 0 : i32
    %c0_i32_1 = arith.constant 0 : i32
    return %c0_i32, %c0_i32_0 : i32, i32
  }
  func.func @transform_4(%arg0: i32, %arg1: i32) -> (i32, i32) {
    %c0_i32 = arith.constant 0 : i32
    return %arg0, %arg1 : i32, i32
  }
}

</mosaic_0001>

<llo_original>
// kernel: tpu_custom_call.1
$region0: #{tpu_custom_call.1}
  #allocation0 [shape = 'u32[]', space=smem, size = 0x4, offset = 0x4, fixed_abs, tag = 'smem constant byte address 0x4 - core index']
  #allocation1 [shape = 'u32[144,128]{1,0:T(1,128)}', space=vmem, size = 0x12000, scoped, tag = 'internal scratch']
  %s0 = inlined_call_operand.hbm [shape: f32[24,32], index: 0, kind: input, shape index: {}]
  %s1 = inlined_call_operand.hbm [shape: f32[32,128], index: 1, kind: input, shape index: {}]
  %s2 = inlined_call_operand.vmem [shape: f32[1,128], index: 2, kind: input, shape index: {}]
  %s3 = inlined_call_operand.vmem [shape: f32[1,32], index: 3, kind: input, shape index: {}]
  %s4 = inlined_call_operand.hbm [shape: f32[24,128], index: 4, kind: output, shape index: {}]
  %s5 = sld [smem:[#allocation0]]
  $region34: #{tpu_custom_call.1} parent=0
    _
  %s7 = ssub.s32 1, %s5
  %s8 = scalar_select 0, %s7, %s5
  $region1: #{tpu_custom_call.1} parent=0
    #allocation2 [shape = 'u8[12288]{0}', space=vmem, size = 0x3000, scoped, tag = 'input window, operand 0, single buffered']
    #allocation3 [shape = 's32[1]{0}', space=sflag, size = 0x4, scoped, tag = 'scoped memory for tpu_custom_call.1']
    #allocation4 [shape = 's32[1]{0}', space=sflag, size = 0x4, scoped, tag = 'scoped memory for tpu_custom_call.1']
    #allocation5 [shape = 'u8[16384]{0}', space=vmem, size = 0x4000, scoped, tag = 'input window, operand 1, single buffered']
    #allocation6 [shape = 's32[1]{0}', space=sflag, size = 0x4, scoped, tag = 'scoped memory for tpu_custom_call.1']
    #allocation7 [shape = 'u8[12288]{0}', space=vmem, size = 0x3000, scoped, tag = 'output window, operand 0, single buffered']
    %9 = vsyncpa [#allocation3], 0
    %10 = vsyncpa [#allocation6], 0
    %11 = vsyncpa [#allocation4], 0
    // Predicated region
    $region2: #{tpu_custom_call.1} parent=1 // pred_check
      _
    $region3: #{tpu_custom_call.1} parent=1 // pred_check_branch
      %13 = sbr.rel (0) target = $region5
    $region4: #{tpu_custom_call.1} parent=1 // pred_region
      %s15 = ssub.s32 384, 384
      %16 = vsyncadd [#allocation3], %s15
      %s17 = sshll.u32 [#allocation2], 4
      %s18 = int_to_ptr.vmem [resolvable:$true] %s17
      %23 = dma.hbm_to_vmem [thread:$0]  %s0, 384, %s18, [#allocation3], 128, 128, 8
    $region5: #{tpu_custom_call.1} parent=1 // pred_fallthru
      _
    // Predicated region
    $region6: #{tpu_custom_call.1} parent=1 // pred_check
      _
    $region7: #{tpu_custom_call.1} parent=1 // pred_check_branch
      %25 = sbr.rel (0) target = $region9
    $region8: #{tpu_custom_call.1} parent=1 // pred_region
      %s27 = ssub.s32 512, 512
      %28 = vsyncadd [#allocation6], %s27
      %s29 = sshll.u32 [#allocation5], 4
      %s30 = int_to_ptr.vmem [resolvable:$true] %s29
      %35 = dma.hbm_to_vmem [thread:$0]  %s1, 512, %s30, [#allocation6], 128, 128, 8
    $region9: #{tpu_custom_call.1} parent=1 // pred_fallthru
      _
    // Predicated region
    $region10: #{tpu_custom_call.1} parent=1 // pred_check
      _
    $region11: #{tpu_custom_call.1} parent=1 // pred_check_branch
      %37 = sbr.rel (0) target = $region13
    $region12: #{tpu_custom_call.1} parent=1 // pred_region
      _
    $region13: #{tpu_custom_call.1} parent=1 // pred_fallthru
      _
    // Predicated region
    $region14: #{tpu_custom_call.1} parent=1 // pred_check
      _
    $region15: #{tpu_custom_call.1} parent=1 // pred_check_branch
      %39 = sbr.rel (0) target = $region17
    $region16: #{tpu_custom_call.1} parent=1 // pred_region
      _
    $region17: #{tpu_custom_call.1} parent=1 // pred_fallthru
      _
    // Predicated region
    $region18: #{tpu_custom_call.1} parent=1 // pred_check
      _
    $region19: #{tpu_custom_call.1} parent=1 // pred_check_branch
      %41 = sbr.rel (0) target = $region21
    $region20: #{tpu_custom_call.1} parent=1 // pred_region
      %42 = dma.done [#allocation3], 384
    $region21: #{tpu_custom_call.1} parent=1 // pred_fallthru
      _
    // Predicated region
    $region22: #{tpu_custom_call.1} parent=1 // pred_check
      _
    $region23: #{tpu_custom_call.1} parent=1 // pred_check_branch
      %44 = sbr.rel (0) target = $region25
    $region24: #{tpu_custom_call.1} parent=1 // pred_region
      %45 = dma.done [#allocation6], 512
    $region25: #{tpu_custom_call.1} parent=1 // pred_fallthru
      _
    %v46 = vld [vmem:[#allocation2] sm:$0xff]
    %v47 = vld [vmem:[#allocation2 + $0x8] sm:$0xff]
    %v48 = vld [vmem:[#allocation2 + $0x10] sm:$0xff]
    %v49 = vmul.f32 %v46, %v46
    %v50 = vmul.f32 %v47, %v47
    %v51 = vmul.f32 %v48, %v48
    %v52 = vld [vmem:[%s3] sm:$0x1]
    %v54 = vlaneseq
    %v55 = vshrl.u32 %v54, 7
    %v56 = vsub.s32 0, %v55
    %v57 = vrot.slane %v52, %v56
    %v59 = vmul.f32 %v49, %v57
    %v60 = vmul.f32 %v50, %v57
    %v61 = vmul.f32 %v51, %v57
    %vm62 = vcmask 261120
    %v63 = vsel %vm62, %v59, 0.0
    %64 = vadd.xlane.f32.xlu0 %v63
    %v65 = vpop.xlane.xlu0 %64
    %v66 = vsel %vm62, %v60, 0.0
    %67 = vadd.xlane.f32.xlu0 %v66
    %v68 = vpop.xlane.xlu0 %67
    %v69 = vsel %vm62, %v61, 0.0
    %70 = vadd.xlane.f32.xlu0 %v69
    %v71 = vpop.xlane.xlu0 %70
    %v72 = vld [vmem:[#allocation5] sm:$0xff]
    %v73 = vld [vmem:[#allocation5 + $0x8] sm:$0xff]
    %v74 = vld [vmem:[#allocation5 + $0x10] sm:$0xff]
    %v75 = vld [vmem:[#allocation5 + $0x18] sm:$0xff]
    %v77 = vsel %vm62, %v46, 0
    %v80 = vsel %vm62, %v47, 0
    %v83 = vsel %vm62, %v48, 0
    %85 = vmatprep.subr.mxu0 0.0
    %86 = vmatpush1.msra.mxu0 %v72
    %87 = vmatprep.subr.mxu0 0.0
    %88 = vmatpush1.msra.mxu0 %v73
    %89 = vmatprep.subr.mxu0 0.0
    %90 = vmatpush1.msra.mxu0 %v74
    %91 = vmatprep.subr.mxu0 0.0
    %92 = vmatpush1.msra.mxu0 %v75
    %93 = vmatprep.subr.mxu0 0.0
    %94 = vmatpush1.msra.mxu0 0.0
    %95 = vmatprep.subr.mxu0 0.0
    %96 = vmatpush1.msra.mxu0 0.0
    %97 = vmatprep.subr.mxu0 0.0
    %98 = vmatpush1.msra.mxu0 0.0
    %99 = vmatprep.subr.mxu0 0.0
    %100 = vmatpush1.msra.mxu0 0.0
    %101 = vmatprep.subr.mxu0 0.0
    %102 = vmatpush1.msra.mxu0 0.0
    %103 = vmatprep.subr.mxu0 0.0
    %104 = vmatpush1.msra.mxu0 0.0
    %105 = vmatprep.subr.mxu0 0.0
    %106 = vmatpush1.msra.mxu0 0.0
    %107 = vmatprep.subr.mxu0 0.0
    %108 = vmatpush1.msra.mxu0 0.0
    %109 = vmatprep.subr.mxu0 0.0
    %110 = vmatpush1.msra.mxu0 0.0
    %111 = vmatprep.subr.mxu0 0.0
    %112 = vmatpush1.msra.mxu0 0.0
    %113 = vmatprep.subr.mxu0 0.0
    %114 = vmatpush1.msra.mxu0 0.0
    %115 = vmatprep.subr.mxu0 0.0
    %116 = vmatpush1.msra.mxu0 0.0
    %117 = vmatprep.subr.mxu0 0.0
    %118 = vmatpush1.msra.mxu0 0.0
    %119 = vmatprep.subr.mxu0 0.0
    %120 = vmatpush1.msra.mxu0 0.0
    %121 = vmatprep.subr.mxu0 0.0
    %122 = vmatpush1.msra.mxu0 0.0
    %123 = vmatprep.subr.mxu0 0.0
    %124 = vmatpush1.msra.mxu0 0.0
    %125 = vmatprep.subr.mxu0 0.0
    %126 = vmatpush1.msra.mxu0 0.0
    %127 = vmatprep.subr.mxu0 0.0
    %128 = vmatpush1.msra.mxu0 0.0
    %129 = vmatprep.subr.mxu0 0.0
    %130 = vmatpush1.msra.mxu0 0.0
    %131 = vmatprep.subr.mxu0 0.0
    %132 = vmatpush1.msra.mxu0 0.0
    %133 = vmatprep.subr.mxu0 0.0
    %134 = vmatpush1.msra.mxu0 0.0
    %135 = vmatprep.subr.mxu0 0.0
    %136 = vmatpush1.msra.mxu0 0.0
    %137 = vmatprep.subr.mxu0 0.0
    %138 = vmatpush1.msra.mxu0 0.0
    %139 = vmatprep.subr.mxu0 0.0
    %140 = vmatpush1.msra.mxu0 0.0
    %141 = vmatprep.subr.mxu0 0.0
    %142 = vmatpush1.msra.mxu0 0.0
    %143 = vmatprep.subr.mxu0 0.0
    %144 = vmatpush1.msra.mxu0 0.0
    %145 = vmatprep.subr.mxu0 0.0
    %146 = vmatpush1.msra.mxu0 0.0
    %147 = vmatprep.subr.mxu0 0.0
    %148 = vmatpush1.msra.mxu0 0.0
    %149 = vmatprep.mubr.f32.mxu0 0.0
    %150 = vmatmul.mubr.f32.gmra.mrb[0].mxu0 %v77
    %v151 = vpop.f32.mrb[0].mxu0
    %v152 = vadd.f32 %v65, %v151
    %v153 = vpop.f32.mrb[0].mxu0
    %154 = vmatprep.mubr.f32.mxu0 0.0
    %155 = vmatmul.mubr.f32.gmra.mrb[0].mxu0 %v80
    %v156 = vpop.f32.mrb[0].mxu0
    %v157 = vadd.f32 %v68, %v156
    %v158 = vpop.f32.mrb[0].mxu0
    %159 = vmatprep.mubr.f32.mxu0 0.0
    %160 = vmatmul.mubr.f32.gmra.mrb[0].mxu0 %v83
    %v161 = vpop.f32.mrb[0].mxu0
    %v162 = vadd.f32 %v71, %v161
    %v163 = vpop.f32.mrb[0].mxu0
    %164 = vdwg.mxu0
    %v165 = vld [vmem:[%s2] sm:$0x1]
    %v167 = vlaneseq
    %v168 = vshrl.u32 %v167, 7
    %v169 = vsub.s32 0, %v168
    %v170 = vrot.slane %v165, %v169
    %v172 = vadd.f32 %v152, %v170
    %v173 = vadd.f32 %v157, %v170
    %v174 = vadd.f32 %v162, %v170
    %v175 = vmul.f32 %v172, 1.442695
    %v176 = vpow.pop %v175
    %v177 = vmul.f32 %v173, 1.442695
    %v178 = vpow.pop %v177
    %v179 = vmul.f32 %v174, 1.442695
    %v180 = vpow.pop %v179
    %181 = vst [vmem:[#allocation7] sm:$0xff] %v176
    %182 = vst [vmem:[#allocation7 + $0x8] sm:$0xff] %v178
    %183 = vst [vmem:[#allocation7 + $0x10] sm:$0xff] %v180
    // Predicated region
    $region26: #{tpu_custom_call.1} parent=1 // pred_check
      _
    $region27: #{tpu_custom_call.1} parent=1 // pred_check_branch
      %185 = sbr.rel (0) target = $region29
    $region28: #{tpu_custom_call.1} parent=1 // pred_region
      %s187 = ssub.s32 384, 384
      %188 = vsyncadd [#allocation4], %s187
      %s189 = sshll.u32 [#allocation7], 4
      %s190 = int_to_ptr.vmem [resolvable:$true] %s189
      %195 = dma.vmem_to_hbm [thread:$0]  %s190, 384, %s4, [#allocation4], 128, 128, 8
    $region29: #{tpu_custom_call.1} parent=1 // pred_fallthru
      _
    // Predicated region
    $region30: #{tpu_custom_call.1} parent=1 // pred_check
      _
    $region31: #{tpu_custom_call.1} parent=1 // pred_check_branch
      %197 = sbr.rel (0) target = $region33
    $region32: #{tpu_custom_call.1} parent=1 // pred_region
      %198 = dma.done [#allocation4], 384
    $region33: #{tpu_custom_call.1} parent=1 // pred_fallthru
      _
    %199 = vsyncpa [#allocation3], 1
    %200 = vsyncpa [#allocation6], 1
    %201 = vsyncpa [#allocation4], 1

</llo_original>
